<compile_context>
chip_gen: v7x
topology: tpu7x:2x2x1
jax: 0.10.0
libtpu: 0.0.40
codegen_flags: <defaults>
</compile_context>

<pallas_src>
import functools

import jax
import jax.numpy as jnp
from jax import lax
from jax.experimental import pallas as pl
from jax.experimental.pallas import tpu as pltpu  # noqa: F401  (TPU backend)


def actor_kernel(xT_ref, w1_ref, b1_ref, w2_ref, b2_ref, prob_t_ref):
    # xT_ref    : (in_dim, B)   activations, batch on lanes (lane-dense)
    # w1_ref    : (hidden, in)  PyTorch layout, consumed directly
    # b1_ref    : (hidden, 1)
    # w2_ref    : (out, hidden)
    # b2_ref    : (out, 1)
    # prob_t_ref: (out, B)      transposed output (batch on lanes)
    xT = xT_ref[...]
    in_dim = xT.shape[0]

    # fc1 on the VPU: in_dim is tiny (4 for CartPole), so a short unrolled
    # chain of broadcast multiply-adds on a (hidden, B) slab beats an MXU
    # push (and avoids any relayout of x).
    acc = w1_ref[:, 0:1] * xT[0:1, :]
    for k in range(1, in_dim):
        acc = acc + w1_ref[:, k:k + 1] * xT[k:k + 1, :]
    h_t = jnp.maximum(acc + b1_ref[...], 0.0)            # (hidden, B)

    # fc2 on the MXU (contraction over hidden): logitsT = W2 @ hT + b2.
    logits_t = lax.dot_general(
        w2_ref[...], h_t,
        dimension_numbers=(((1,), (0,)), ((), ())),
        preferred_element_type=jnp.float32,
        precision=lax.Precision.HIGHEST,
    ) + b2_ref[...]                                      # (out, B)

    # Numerically-stable softmax over the action axis (axis 0 here).
    m = jnp.max(logits_t, axis=0, keepdims=True)
    e = jnp.exp(logits_t - m)
    s = jnp.sum(e, axis=0, keepdims=True)
    prob_t_ref[...] = (e / s).astype(prob_t_ref.dtype)   # exact reciprocal


def prepare_actor_params(w1, b1, w2, b2):
    """One-time layout prep (outside the per-step hot path)."""
    return w1, b1.reshape(-1, 1), w2, b2.reshape(-1, 1)


@jax.jit
def actor_forward(x, w1, b1_col, w2, b2_col):
    """x: (B, in); w1: (hidden, in); b1_col: (hidden, 1);
    w2: (out, hidden); b2_col: (out, 1).  Returns (B, out) probabilities."""
    B, in_dim = x.shape
    hidden = w1.shape[0]
    out_dim = w2.shape[0]

    # Lane-dense activation slab; fuses into this jit (no standalone transpose op).
    xT = x.T                                             # (in_dim, B)

    flops = 2 * B * (in_dim * hidden + hidden * out_dim)
    bytes_accessed = 4 * (x.size + w1.size + b1_col.size + w2.size
                          + b2_col.size + B * out_dim)

    # Single invocation: no grid, whole arrays resident in VMEM.  At this
    # problem size any grid step only adds fixed overhead.
    prob_t = pl.pallas_call(
        actor_kernel,
        out_shape=jax.ShapeDtypeStruct((out_dim, B), jnp.float32),
        cost_estimate=pl.CostEstimate(
            flops=flops,
            transcendentals=B * out_dim,
            bytes_accessed=bytes_accessed,
        ),
    )(xT, w1, b1_col, w2, b2_col)

    # Layout plumbing only (fused by jit): present (B, out) PyTorch semantics.
    return prob_t.T


if __name__ == "__main__":
    # CartPole-like sizes: obs dim 4, hidden 32, 2 actions, batch 128
    # (vectorized envs) — small enough that one kernel invocation covers it.
    batch, input_size, hidden_size, output_size = 128, 4, 32, 2

    key = jax.random.PRNGKey(0)
    kx, kw1, kb1, kw2, kb2 = jax.random.split(key, 5)

    x = jax.random.normal(kx, (batch, input_size), dtype=jnp.float32)
    bound1 = 1.0 / (input_size ** 0.5)
    bound2 = 1.0 / (hidden_size ** 0.5)
    w1 = jax.random.uniform(kw1, (hidden_size, input_size), jnp.float32, -bound1, bound1)
    b1 = jax.random.uniform(kb1, (hidden_size,), jnp.float32, -bound1, bound1)
    w2 = jax.random.uniform(kw2, (output_size, hidden_size), jnp.float32, -bound2, bound2)
    b2 = jax.random.uniform(kb2, (output_size,), jnp.float32, -bound2, bound2)

    # One-time parameter prep (once per PPO run, not per step).
    w1_p, b1_col, w2_p, b2_col = prepare_actor_params(w1, b1, w2, b2)

    prob = actor_forward(x, w1_p, b1_col, w2_p, b2_col)
    prob = jax.block_until_ready(prob)

    # Reference check in plain JAX (original PyTorch semantics).
    h_ref = jnp.maximum(x @ w1.T + b1, 0.0)
    prob_ref = jax.nn.softmax(h_ref @ w2.T + b2, axis=-1)
    assert prob.shape == (batch, output_size)
    assert jnp.allclose(prob, prob_ref, atol=1e-5, rtol=1e-5)
    assert jnp.allclose(jnp.sum(prob, axis=-1), 1.0, atol=1e-5)

    # Also exercise a small batch (single env step).
    x_small = x[:8]
    prob_small = jax.block_until_ready(
        actor_forward(x_small, w1_p, b1_col, w2_p, b2_col))
    assert jnp.allclose(prob_small, prob_ref[:8], atol=1e-5, rtol=1e-5)

    print("KERNEL_OK")
</pallas_src>

<mosaic_0001>
module attributes {stable_mosaic.version = 11 : i64} {
  func.func @actor_kernel(%arg0: memref<4x128xf32, #tpu.memory_space<vmem>>, %arg1: memref<32x4xf32, #tpu.memory_space<vmem>>, %arg2: memref<32x1xf32, #tpu.memory_space<vmem>>, %arg3: memref<2x32xf32, #tpu.memory_space<vmem>>, %arg4: memref<2x1xf32, #tpu.memory_space<vmem>>, %arg5: memref<2x128xf32, #tpu.memory_space<vmem>>) attributes {dimension_semantics = [], scalar_prefetch = 0 : i64, scratch_operands = 0 : i64, tpu.core_type = #tpu.core_type<tc>} {
    %c0 = arith.constant 0 : index
    %c0_0 = arith.constant 0 : index
    %0 = vector.load %arg0[%c0, %c0_0] : memref<4x128xf32, #tpu.memory_space<vmem>>, vector<4x128xf32>
    %c0_1 = arith.constant 0 : index
    %c0_2 = arith.constant 0 : index
    %1 = vector.load %arg1[%c0_1, %c0_2] : memref<32x4xf32, #tpu.memory_space<vmem>>, vector<32x1xf32>
    %2 = vector.extract_strided_slice %0 {offsets = [0, 0], sizes = [1, 128], strides = [1, 1]} : vector<4x128xf32> to vector<1x128xf32>
    %3 = vector.broadcast %1 : vector<32x1xf32> to vector<32x128xf32>
    %4 = vector.broadcast %2 : vector<1x128xf32> to vector<32x128xf32>
    %5 = arith.mulf %3, %4 : vector<32x128xf32>
    %c0_3 = arith.constant 0 : index
    %c1 = arith.constant 1 : index
    %6 = vector.load %arg1[%c0_3, %c1] : memref<32x4xf32, #tpu.memory_space<vmem>>, vector<32x1xf32>
    %7 = vector.extract_strided_slice %0 {offsets = [1, 0], sizes = [1, 128], strides = [1, 1]} : vector<4x128xf32> to vector<1x128xf32>
    %8 = vector.broadcast %6 : vector<32x1xf32> to vector<32x128xf32>
    %9 = vector.broadcast %7 : vector<1x128xf32> to vector<32x128xf32>
    %10 = arith.mulf %8, %9 : vector<32x128xf32>
    %11 = arith.addf %5, %10 : vector<32x128xf32>
    %c0_4 = arith.constant 0 : index
    %c2 = arith.constant 2 : index
    %12 = vector.load %arg1[%c0_4, %c2] : memref<32x4xf32, #tpu.memory_space<vmem>>, vector<32x1xf32>
    %13 = vector.extract_strided_slice %0 {offsets = [2, 0], sizes = [1, 128], strides = [1, 1]} : vector<4x128xf32> to vector<1x128xf32>
    %14 = vector.broadcast %12 : vector<32x1xf32> to vector<32x128xf32>
    %15 = vector.broadcast %13 : vector<1x128xf32> to vector<32x128xf32>
    %16 = arith.mulf %14, %15 : vector<32x128xf32>
    %17 = arith.addf %11, %16 : vector<32x128xf32>
    %c0_5 = arith.constant 0 : index
    %c3 = arith.constant 3 : index
    %18 = vector.load %arg1[%c0_5, %c3] : memref<32x4xf32, #tpu.memory_space<vmem>>, vector<32x1xf32>
    %19 = vector.extract_strided_slice %0 {offsets = [3, 0], sizes = [1, 128], strides = [1, 1]} : vector<4x128xf32> to vector<1x128xf32>
    %20 = vector.broadcast %18 : vector<32x1xf32> to vector<32x128xf32>
    %21 = vector.broadcast %19 : vector<1x128xf32> to vector<32x128xf32>
    %22 = arith.mulf %20, %21 : vector<32x128xf32>
    %23 = arith.addf %17, %22 : vector<32x128xf32>
    %c0_6 = arith.constant 0 : index
    %c0_7 = arith.constant 0 : index
    %24 = vector.load %arg2[%c0_6, %c0_7] : memref<32x1xf32, #tpu.memory_space<vmem>>, vector<32x1xf32>
    %25 = vector.broadcast %24 : vector<32x1xf32> to vector<32x128xf32>
    %26 = arith.addf %23, %25 : vector<32x128xf32>
    %cst = arith.constant 0.000000e+00 : f32
    %27 = vector.broadcast %cst : f32 to vector<32x128xf32>
    %28 = arith.maximumf %26, %27 : vector<32x128xf32>
    %c0_8 = arith.constant 0 : index
    %c0_9 = arith.constant 0 : index
    %29 = vector.load %arg3[%c0_8, %c0_9] : memref<2x32xf32, #tpu.memory_space<vmem>>, vector<2x32xf32>
    %cst_10 = arith.constant dense<0.000000e+00> : vector<2x128xf32>
    %30 = tpu.matmul %29, %28, %cst_10 {dimension_numbers = #tpu.dot_dimension_numbers<[1], [0], [0], [1], [0, 0, 1, 1], [], []>, precision = #tpu.contract_precision<fp32>} : vector<2x32xf32>, vector<32x128xf32>, vector<2x128xf32> -> vector<2x128xf32>
    %c0_11 = arith.constant 0 : index
    %c0_12 = arith.constant 0 : index
    %31 = vector.load %arg4[%c0_11, %c0_12] : memref<2x1xf32, #tpu.memory_space<vmem>>, vector<2x1xf32>
    %32 = vector.broadcast %31 : vector<2x1xf32> to vector<2x128xf32>
    %33 = arith.addf %30, %32 : vector<2x128xf32>
    %cst_13 = arith.constant dense<0xFF800000> : vector<128xf32>
    %34 = vector.multi_reduction <maximumf>, %33, %cst_13 [0] : vector<2x128xf32> to vector<128xf32>
    %35 = vector.shape_cast %34 : vector<128xf32> to vector<1x128xf32>
    %36 = vector.broadcast %35 : vector<1x128xf32> to vector<2x128xf32>
    %37 = arith.subf %33, %36 : vector<2x128xf32>
    %38 = math.exp %37 : vector<2x128xf32>
    %cst_14 = arith.constant dense<0.000000e+00> : vector<128xf32>
    %39 = vector.multi_reduction <add>, %38, %cst_14 [0] : vector<2x128xf32> to vector<128xf32>
    %40 = vector.shape_cast %39 : vector<128xf32> to vector<1x128xf32>
    %41 = vector.broadcast %40 : vector<1x128xf32> to vector<2x128xf32>
    %42 = arith.divf %38, %41 : vector<2x128xf32>
    %c0_15 = arith.constant 0 : index
    %c0_16 = arith.constant 0 : index
    %43 = vector.load %arg5[%c0_15, %c0_16] : memref<2x128xf32, #tpu.memory_space<vmem>>, vector<2x128xf32>
    tpu.vector_store %arg5[%c0_15, %c0_16], %42 {strides = array<i32>} : memref<2x128xf32, #tpu.memory_space<vmem>>, vector<2x128xf32>,
    return
  }
}

</mosaic_0001>

<llo_original>
// kernel: actor_forward.1
$region0: #{actor_forward.1}
  #allocation0 [shape = 'u32[]', space=smem, size = 0x4, offset = 0x4, fixed_abs, tag = 'smem constant byte address 0x4 - core index']
  #allocation1 [shape = 'u32[144,128]{1,0:T(1,128)}', space=vmem, size = 0x12000, scoped, tag = 'internal scratch']
  %s0 = inlined_call_operand.vmem [shape: f32[4,128], index: 0, kind: input, shape index: {}]
  %s1 = inlined_call_operand.vmem [shape: f32[32,4], index: 1, kind: input, shape index: {}]
  %s2 = inlined_call_operand.vmem [shape: f32[32,1], index: 2, kind: input, shape index: {}]
  %s3 = inlined_call_operand.vmem [shape: f32[2,32], index: 3, kind: input, shape index: {}]
  %s4 = inlined_call_operand.vmem [shape: f32[2,1], index: 4, kind: input, shape index: {}]
  %s5 = inlined_call_operand.hbm [shape: f32[2,128], index: 5, kind: output, shape index: {}]
  %s6 = sld [smem:[#allocation0]]
  $region30: #{actor_forward.1} parent=0
    _
  %s8 = ssub.s32 1, %s6
  %s9 = scalar_select 0, %s8, %s6
  $region1: #{actor_forward.1} parent=0
    #allocation2 [shape = 'u8[1024]{0}', space=vmem, size = 0x400, scoped, tag = 'output window, operand 0, single buffered']
    #allocation3 [shape = 's32[1]{0}', space=sflag, size = 0x4, scoped, tag = 'scoped memory for actor_forward.1']
    %10 = vsyncpa [#allocation3], 0
    // Predicated region
    $region2: #{actor_forward.1} parent=1 // pred_check
      _
    $region3: #{actor_forward.1} parent=1 // pred_check_branch
      %12 = sbr.rel (0) target = $region5
    $region4: #{actor_forward.1} parent=1 // pred_region
      _
    $region5: #{actor_forward.1} parent=1 // pred_fallthru
      _
    // Predicated region
    $region6: #{actor_forward.1} parent=1 // pred_check
      _
    $region7: #{actor_forward.1} parent=1 // pred_check_branch
      %14 = sbr.rel (0) target = $region9
    $region8: #{actor_forward.1} parent=1 // pred_region
      _
    $region9: #{actor_forward.1} parent=1 // pred_fallthru
      _
    // Predicated region
    $region10: #{actor_forward.1} parent=1 // pred_check
      _
    $region11: #{actor_forward.1} parent=1 // pred_check_branch
      %16 = sbr.rel (0) target = $region13
    $region12: #{actor_forward.1} parent=1 // pred_region
      _
    $region13: #{actor_forward.1} parent=1 // pred_fallthru
      _
    // Predicated region
    $region14: #{actor_forward.1} parent=1 // pred_check
      _
    $region15: #{actor_forward.1} parent=1 // pred_check_branch
      %18 = sbr.rel (0) target = $region17
    $region16: #{actor_forward.1} parent=1 // pred_region
      _
    $region17: #{actor_forward.1} parent=1 // pred_fallthru
      _
    // Predicated region
    $region18: #{actor_forward.1} parent=1 // pred_check
      _
    $region19: #{actor_forward.1} parent=1 // pred_check_branch
      %20 = sbr.rel (0) target = $region21
    $region20: #{actor_forward.1} parent=1 // pred_region
      _
    $region21: #{actor_forward.1} parent=1 // pred_fallthru
      _
    %v21 = vld [vmem:[%s0] sm:$0xf]
    %v22 = vld [vmem:[%s1] sm:$0xff]
    %v23 = vld [vmem:[%s1 + $0x8] sm:$0xff]
    %v24 = vld [vmem:[%s1 + $0x10] sm:$0xff]
    %v25 = vld [vmem:[%s1 + $0x18] sm:$0xff]
    %27 = vset.pattern.permute.xlu0 0
    %28 = vperm.xlu0 %27, %v22
    %v29 = vpop.permute.xlu0 %28
    %32 = vset.pattern.permute.xlu0 0
    %33 = vperm.xlu0 %32, %v23
    %v34 = vpop.permute.xlu0 %33
    %37 = vset.pattern.permute.xlu0 0
    %38 = vperm.xlu0 %37, %v24
    %v39 = vpop.permute.xlu0 %38
    %42 = vset.pattern.permute.xlu0 0
    %43 = vperm.xlu0 %42, %v25
    %v44 = vpop.permute.xlu0 %43
    %v46 = vlaneseq
    %v47 = vshrl.u32 %v46, 7
    %v48 = vsub.s32 0, %v47
    %v49 = vrot.slane %v21, %v48
    %v50 = vmul.f32 %v29, %v49
    %v51 = vmul.f32 %v34, %v49
    %v52 = vmul.f32 %v39, %v49
    %v53 = vmul.f32 %v44, %v49
    %54 = vset.pattern.permute.xlu0 1
    %55 = vperm.xlu0 %54, %v22
    %v56 = vpop.permute.xlu0 %55
    %58 = vset.pattern.permute.xlu0 1
    %59 = vperm.xlu0 %58, %v23
    %v60 = vpop.permute.xlu0 %59
    %62 = vset.pattern.permute.xlu0 1
    %63 = vperm.xlu0 %62, %v24
    %v64 = vpop.permute.xlu0 %63
    %66 = vset.pattern.permute.xlu0 1
    %67 = vperm.xlu0 %66, %v25
    %v68 = vpop.permute.xlu0 %67
    %v70 = vlaneseq
    %v71 = vshrl.u32 %v70, 7
    %v72 = vsub.s32 1, %v71
    %v73 = vrot.slane %v21, %v72
    %v74 = vmul.f32 %v56, %v73
    %v75 = vmul.f32 %v60, %v73
    %v76 = vmul.f32 %v64, %v73
    %v77 = vmul.f32 %v68, %v73
    %v78 = vadd.f32 %v50, %v74
    %v79 = vadd.f32 %v51, %v75
    %v80 = vadd.f32 %v52, %v76
    %v81 = vadd.f32 %v53, %v77
    %82 = vset.pattern.permute.xlu0 2
    %83 = vperm.xlu0 %82, %v22
    %v84 = vpop.permute.xlu0 %83
    %86 = vset.pattern.permute.xlu0 2
    %87 = vperm.xlu0 %86, %v23
    %v88 = vpop.permute.xlu0 %87
    %90 = vset.pattern.permute.xlu0 2
    %91 = vperm.xlu0 %90, %v24
    %v92 = vpop.permute.xlu0 %91
    %94 = vset.pattern.permute.xlu0 2
    %95 = vperm.xlu0 %94, %v25
    %v96 = vpop.permute.xlu0 %95
    %v98 = vlaneseq
    %v99 = vshrl.u32 %v98, 7
    %v100 = vsub.s32 2, %v99
    %v101 = vrot.slane %v21, %v100
    %v102 = vmul.f32 %v84, %v101
    %v103 = vmul.f32 %v88, %v101
    %v104 = vmul.f32 %v92, %v101
    %v105 = vmul.f32 %v96, %v101
    %v106 = vadd.f32 %v78, %v102
    %v107 = vadd.f32 %v79, %v103
    %v108 = vadd.f32 %v80, %v104
    %v109 = vadd.f32 %v81, %v105
    %110 = vset.pattern.permute.xlu0 3
    %111 = vperm.xlu0 %110, %v22
    %v112 = vpop.permute.xlu0 %111
    %114 = vset.pattern.permute.xlu0 3
    %115 = vperm.xlu0 %114, %v23
    %v116 = vpop.permute.xlu0 %115
    %118 = vset.pattern.permute.xlu0 3
    %119 = vperm.xlu0 %118, %v24
    %v120 = vpop.permute.xlu0 %119
    %122 = vset.pattern.permute.xlu0 3
    %123 = vperm.xlu0 %122, %v25
    %v124 = vpop.permute.xlu0 %123
    %v126 = vlaneseq
    %v127 = vshrl.u32 %v126, 7
    %v128 = vsub.s32 3, %v127
    %v129 = vrot.slane %v21, %v128
    %v130 = vmul.f32 %v112, %v129
    %v131 = vmul.f32 %v116, %v129
    %v132 = vmul.f32 %v120, %v129
    %v133 = vmul.f32 %v124, %v129
    %v134 = vadd.f32 %v106, %v130
    %v135 = vadd.f32 %v107, %v131
    %v136 = vadd.f32 %v108, %v132
    %v137 = vadd.f32 %v109, %v133
    %v138 = vld [vmem:[%s2] sm:$0xff]
    %v139 = vld [vmem:[%s2 + $0x8] sm:$0xff]
    %v140 = vld [vmem:[%s2 + $0x10] sm:$0xff]
    %v141 = vld [vmem:[%s2 + $0x18] sm:$0xff]
    %143 = vset.pattern.permute.xlu0 0
    %144 = vperm.xlu0 %143, %v138
    %v145 = vpop.permute.xlu0 %144
    %148 = vset.pattern.permute.xlu0 0
    %149 = vperm.xlu0 %148, %v139
    %v150 = vpop.permute.xlu0 %149
    %153 = vset.pattern.permute.xlu0 0
    %154 = vperm.xlu0 %153, %v140
    %v155 = vpop.permute.xlu0 %154
    %158 = vset.pattern.permute.xlu0 0
    %159 = vperm.xlu0 %158, %v141
    %v160 = vpop.permute.xlu0 %159
    %v162 = vadd.f32 %v134, %v145
    %v163 = vadd.f32 %v135, %v150
    %v164 = vadd.f32 %v136, %v155
    %v165 = vadd.f32 %v137, %v160
    %v166 = vmax.f32 %v162, 0.0
    %v167 = vmax.f32 %v163, 0.0
    %v168 = vmax.f32 %v164, 0.0
    %v169 = vmax.f32 %v165, 0.0
    %v170 = vld [vmem:[%s3] sm:$0x3]
    %v171 = vld [vmem:[%s4] sm:$0x3]
    %173 = vset.pattern.permute.xlu0 0
    %174 = vperm.xlu0 %173, %v171
    %v175 = vpop.permute.xlu0 %174
    %vm177 = vcmask 261120
    %v179 = vsel %vm177, %v170, 0
    %181 = vmatprep.subr.mxu0 0.0
    %v182 = vand.u32 %v166, 4294901760
    %183 = vmatpush1.msra.mxu0 %v182
    %184 = vmatprep.subr.mxu0 0.0
    %v185 = vand.u32 %v167, 4294901760
    %186 = vmatpush1.msra.mxu0 %v185
    %187 = vmatprep.subr.mxu0 0.0
    %v188 = vand.u32 %v168, 4294901760
    %189 = vmatpush1.msra.mxu0 %v188
    %190 = vmatprep.subr.mxu0 0.0
    %v191 = vand.u32 %v169, 4294901760
    %192 = vmatpush1.msra.mxu0 %v191
    %193 = vmatprep.subr.mxu0 0.0
    %194 = vmatpush1.msra.mxu0 0.0
    %195 = vmatprep.subr.mxu0 0.0
    %196 = vmatpush1.msra.mxu0 0.0
    %197 = vmatprep.subr.mxu0 0.0
    %198 = vmatpush1.msra.mxu0 0.0
    %199 = vmatprep.subr.mxu0 0.0
    %200 = vmatpush1.msra.mxu0 0.0
    %201 = vmatprep.subr.mxu0 0.0
    %202 = vmatpush1.msra.mxu0 0.0
    %203 = vmatprep.subr.mxu0 0.0
    %204 = vmatpush1.msra.mxu0 0.0
    %205 = vmatprep.subr.mxu0 0.0
    %206 = vmatpush1.msra.mxu0 0.0
    %207 = vmatprep.subr.mxu0 0.0
    %208 = vmatpush1.msra.mxu0 0.0
    %209 = vmatprep.subr.mxu0 0.0
    %210 = vmatpush1.msra.mxu0 0.0
    %211 = vmatprep.subr.mxu0 0.0
    %212 = vmatpush1.msra.mxu0 0.0
    %213 = vmatprep.subr.mxu0 0.0
    %214 = vmatpush1.msra.mxu0 0.0
    %215 = vmatprep.subr.mxu0 0.0
    %216 = vmatpush1.msra.mxu0 0.0
    %217 = vmatprep.subr.mxu0 0.0
    %218 = vmatpush1.msra.mxu0 0.0
    %219 = vmatprep.subr.mxu0 0.0
    %220 = vmatpush1.msra.mxu0 0.0
    %221 = vmatprep.subr.mxu0 0.0
    %222 = vmatpush1.msra.mxu0 0.0
    %223 = vmatprep.subr.mxu0 0.0
    %224 = vmatpush1.msra.mxu0 0.0
    %225 = vmatprep.subr.mxu0 0.0
    %226 = vmatpush1.msra.mxu0 0.0
    %227 = vmatprep.subr.mxu0 0.0
    %228 = vmatpush1.msra.mxu0 0.0
    %229 = vmatprep.subr.mxu0 0.0
    %230 = vmatpush1.msra.mxu0 0.0
    %231 = vmatprep.subr.mxu0 0.0
    %232 = vmatpush1.msra.mxu0 0.0
    %233 = vmatprep.subr.mxu0 0.0
    %234 = vmatpush1.msra.mxu0 0.0
    %235 = vmatprep.subr.mxu0 0.0
    %236 = vmatpush1.msra.mxu0 0.0
    %237 = vmatprep.subr.mxu0 0.0
    %238 = vmatpush1.msra.mxu0 0.0
    %239 = vmatprep.subr.mxu0 0.0
    %240 = vmatpush1.msra.mxu0 0.0
    %241 = vmatprep.subr.mxu0 0.0
    %242 = vmatpush1.msra.mxu0 0.0
    %243 = vmatprep.subr.mxu0 0.0
    %244 = vmatpush1.msra.mxu0 0.0
    %245 = vmatprep.subr.mxu0 0.0
    %246 = vmatpush1.msra.mxu0 0.0
    %247 = vmatprep.subr.mxu0 0.0
    %248 = vmatpush1.msra.mxu0 0.0
    %249 = vmatprep.mubr.f32.mxu0 0.0
    %v250 = vand.u32 %v179, 4294901760
    %v251 = vsub.f32 %v179, %v250
    %v252 = vand.u32 %v251, 4294901760
    %v253 = vsub.f32 %v251, %v252
    %v254 = vand.u32 %v253, 4294901760
    %255 = vmatmul.mubr.f32.gmra.mrb[0].mxu0 %v254
    %v256 = vpop.f32.mrb[0].mxu0
    %v257 = vadd.f32 %v175, %v256
    %v258 = vpop.f32.mrb[0].mxu0
    %259 = vdwg.mxu0
    %260 = vmatprep.subr.mxu0 0.0
    %v261 = vand.u32 %v166, 4294901760
    %v262 = vsub.f32 %v166, %v261
    %v263 = vand.u32 %v262, 4294901760
    %v264 = vsub.f32 %v262, %v263
    %v265 = vand.u32 %v264, 4294901760
    %266 = vmatpush1.msra.mxu0 %v265
    %267 = vmatprep.subr.mxu0 0.0
    %v268 = vand.u32 %v167, 4294901760
    %v269 = vsub.f32 %v167, %v268
    %v270 = vand.u32 %v269, 4294901760
    %v271 = vsub.f32 %v269, %v270
    %v272 = vand.u32 %v271, 4294901760
    %273 = vmatpush1.msra.mxu0 %v272
    %274 = vmatprep.subr.mxu0 0.0
    %v275 = vand.u32 %v168, 4294901760
    %v276 = vsub.f32 %v168, %v275
    %v277 = vand.u32 %v276, 4294901760
    %v278 = vsub.f32 %v276, %v277
    %v279 = vand.u32 %v278, 4294901760
    %280 = vmatpush1.msra.mxu0 %v279
    %281 = vmatprep.subr.mxu0 0.0
    %v282 = vand.u32 %v169, 4294901760
    %v283 = vsub.f32 %v169, %v282
    %v284 = vand.u32 %v283, 4294901760
    %v285 = vsub.f32 %v283, %v284
    %v286 = vand.u32 %v285, 4294901760
    %287 = vmatpush1.msra.mxu0 %v286
    %288 = vmatprep.subr.mxu0 0.0
    %289 = vmatpush1.msra.mxu0 0.0
    %290 = vmatprep.subr.mxu0 0.0
    %291 = vmatpush1.msra.mxu0 0.0
    %292 = vmatprep.subr.mxu0 0.0
    %293 = vmatpush1.msra.mxu0 0.0
    %294 = vmatprep.subr.mxu0 0.0
    %295 = vmatpush1.msra.mxu0 0.0
    %296 = vmatprep.subr.mxu0 0.0
    %297 = vmatpush1.msra.mxu0 0.0
    %298 = vmatprep.subr.mxu0 0.0
    %299 = vmatpush1.msra.mxu0 0.0
    %300 = vmatprep.subr.mxu0 0.0
    %301 = vmatpush1.msra.mxu0 0.0
    %302 = vmatprep.subr.mxu0 0.0
    %303 = vmatpush1.msra.mxu0 0.0
    %304 = vmatprep.subr.mxu0 0.0
    %305 = vmatpush1.msra.mxu0 0.0
    %306 = vmatprep.subr.mxu0 0.0
    %307 = vmatpush1.msra.mxu0 0.0
    %308 = vmatprep.subr.mxu0 0.0
    %309 = vmatpush1.msra.mxu0 0.0
    %310 = vmatprep.subr.mxu0 0.0
    %311 = vmatpush1.msra.mxu0 0.0
    %312 = vmatprep.subr.mxu0 0.0
    %313 = vmatpush1.msra.mxu0 0.0
    %314 = vmatprep.subr.mxu0 0.0
    %315 = vmatpush1.msra.mxu0 0.0
    %316 = vmatprep.subr.mxu0 0.0
    %317 = vmatpush1.msra.mxu0 0.0
    %318 = vmatprep.subr.mxu0 0.0
    %319 = vmatpush1.msra.mxu0 0.0
    %320 = vmatprep.subr.mxu0 0.0
    %321 = vmatpush1.msra.mxu0 0.0
    %322 = vmatprep.subr.mxu0 0.0
    %323 = vmatpush1.msra.mxu0 0.0
    %324 = vmatprep.subr.mxu0 0.0
    %325 = vmatpush1.msra.mxu0 0.0
    %326 = vmatprep.subr.mxu0 0.0
    %327 = vmatpush1.msra.mxu0 0.0
    %328 = vmatprep.subr.mxu0 0.0
    %329 = vmatpush1.msra.mxu0 0.0
    %330 = vmatprep.subr.mxu0 0.0
    %331 = vmatpush1.msra.mxu0 0.0
    %332 = vmatprep.subr.mxu0 0.0
    %333 = vmatpush1.msra.mxu0 0.0
    %334 = vmatprep.subr.mxu0 0.0
    %335 = vmatpush1.msra.mxu0 0.0
    %336 = vmatprep.subr.mxu0 0.0
    %337 = vmatpush1.msra.mxu0 0.0
    %338 = vmatprep.subr.mxu0 0.0
    %339 = vmatpush1.msra.mxu0 0.0
    %340 = vmatprep.subr.mxu0 0.0
    %341 = vmatpush1.msra.mxu0 0.0
    %342 = vmatprep.subr.mxu0 0.0
    %343 = vmatpush1.msra.mxu0 0.0
    %344 = vmatprep.mubr.f32.mxu0 0.0
    %v345 = vand.u32 %v179, 4294901760
    %346 = vmatmul.mubr.f32.gmra.mrb[0].mxu0 %v345
    %v347 = vpop.f32.mrb[0].mxu0
    %v348 = vadd.f32 %v257, %v347
    %v349 = vpop.f32.mrb[0].mxu0
    %350 = vdwg.mxu0
    %351 = vmatprep.subr.mxu0 0.0
    %v352 = vand.u32 %v166, 4294901760
    %v353 = vsub.f32 %v166, %v352
    %354 = vmatpush1.msra.mxu0 %v353
    %355 = vmatprep.subr.mxu0 0.0
    %v356 = vand.u32 %v167, 4294901760
    %v357 = vsub.f32 %v167, %v356
    %358 = vmatpush1.msra.mxu0 %v357
    %359 = vmatprep.subr.mxu0 0.0
    %v360 = vand.u32 %v168, 4294901760
    %v361 = vsub.f32 %v168, %v360
    %362 = vmatpush1.msra.mxu0 %v361
    %363 = vmatprep.subr.mxu0 0.0
    %v364 = vand.u32 %v169, 4294901760
    %v365 = vsub.f32 %v169, %v364
    %366 = vmatpush1.msra.mxu0 %v365
    %367 = vmatprep.subr.mxu0 0.0
    %368 = vmatpush1.msra.mxu0 0.0
    %369 = vmatprep.subr.mxu0 0.0
    %370 = vmatpush1.msra.mxu0 0.0
    %371 = vmatprep.subr.mxu0 0.0
    %372 = vmatpush1.msra.mxu0 0.0
    %373 = vmatprep.subr.mxu0 0.0
    %374 = vmatpush1.msra.mxu0 0.0
    %375 = vmatprep.subr.mxu0 0.0
    %376 = vmatpush1.msra.mxu0 0.0
    %377 = vmatprep.subr.mxu0 0.0
    %378 = vmatpush1.msra.mxu0 0.0
    %379 = vmatprep.subr.mxu0 0.0
    %380 = vmatpush1.msra.mxu0 0.0
    %381 = vmatprep.subr.mxu0 0.0
    %382 = vmatpush1.msra.mxu0 0.0
    %383 = vmatprep.subr.mxu0 0.0
    %384 = vmatpush1.msra.mxu0 0.0
    %385 = vmatprep.subr.mxu0 0.0
    %386 = vmatpush1.msra.mxu0 0.0
    %387 = vmatprep.subr.mxu0 0.0
    %388 = vmatpush1.msra.mxu0 0.0
    %389 = vmatprep.subr.mxu0 0.0
    %390 = vmatpush1.msra.mxu0 0.0
    %391 = vmatprep.subr.mxu0 0.0
    %392 = vmatpush1.msra.mxu0 0.0
    %393 = vmatprep.subr.mxu0 0.0
    %394 = vmatpush1.msra.mxu0 0.0
    %395 = vmatprep.subr.mxu0 0.0
    %396 = vmatpush1.msra.mxu0 0.0
    %397 = vmatprep.subr.mxu0 0.0
    %398 = vmatpush1.msra.mxu0 0.0
    %399 = vmatprep.subr.mxu0 0.0
    %400 = vmatpush1.msra.mxu0 0.0
    %401 = vmatprep.subr.mxu0 0.0
    %402 = vmatpush1.msra.mxu0 0.0
    %403 = vmatprep.subr.mxu0 0.0
    %404 = vmatpush1.msra.mxu0 0.0
    %405 = vmatprep.subr.mxu0 0.0
    %406 = vmatpush1.msra.mxu0 0.0
    %407 = vmatprep.subr.mxu0 0.0
    %408 = vmatpush1.msra.mxu0 0.0
    %409 = vmatprep.subr.mxu0 0.0
    %410 = vmatpush1.msra.mxu0 0.0
    %411 = vmatprep.subr.mxu0 0.0
    %412 = vmatpush1.msra.mxu0 0.0
    %413 = vmatprep.subr.mxu0 0.0
    %414 = vmatpush1.msra.mxu0 0.0
    %415 = vmatprep.subr.mxu0 0.0
    %416 = vmatpush1.msra.mxu0 0.0
    %417 = vmatprep.subr.mxu0 0.0
    %418 = vmatpush1.msra.mxu0 0.0
    %419 = vmatprep.subr.mxu0 0.0
    %420 = vmatpush1.msra.mxu0 0.0
    %421 = vmatprep.subr.mxu0 0.0
    %422 = vmatpush1.msra.mxu0 0.0
    %423 = vmatprep.mubr.f32.mxu0 0.0
    %v424 = vand.u32 %v179, 4294901760
    %v425 = vsub.f32 %v179, %v424
    %426 = vmatmul.mubr.f32.gmra.mrb[0].mxu0 %v425
    %v427 = vpop.f32.mrb[0].mxu0
    %v428 = vadd.f32 %v348, %v427
    %v429 = vpop.f32.mrb[0].mxu0
    %430 = vdwg.mxu0
    %431 = vmatprep.subr.mxu0 0.0
    %v432 = vand.u32 %v166, 4294901760
    %433 = vmatpush1.msra.mxu0 %v432
    %434 = vmatprep.subr.mxu0 0.0
    %v435 = vand.u32 %v167, 4294901760
    %436 = vmatpush1.msra.mxu0 %v435
    %437 = vmatprep.subr.mxu0 0.0
    %v438 = vand.u32 %v168, 4294901760
    %439 = vmatpush1.msra.mxu0 %v438
    %440 = vmatprep.subr.mxu0 0.0
    %v441 = vand.u32 %v169, 4294901760
    %442 = vmatpush1.msra.mxu0 %v441
    %443 = vmatprep.subr.mxu0 0.0
    %444 = vmatpush1.msra.mxu0 0.0
    %445 = vmatprep.subr.mxu0 0.0
    %446 = vmatpush1.msra.mxu0 0.0
    %447 = vmatprep.subr.mxu0 0.0
    %448 = vmatpush1.msra.mxu0 0.0
    %449 = vmatprep.subr.mxu0 0.0
    %450 = vmatpush1.msra.mxu0 0.0
    %451 = vmatprep.subr.mxu0 0.0
    %452 = vmatpush1.msra.mxu0 0.0
    %453 = vmatprep.subr.mxu0 0.0
    %454 = vmatpush1.msra.mxu0 0.0
    %455 = vmatprep.subr.mxu0 0.0
    %456 = vmatpush1.msra.mxu0 0.0
    %457 = vmatprep.subr.mxu0 0.0
    %458 = vmatpush1.msra.mxu0 0.0
    %459 = vmatprep.subr.mxu0 0.0
    %460 = vmatpush1.msra.mxu0 0.0
    %461 = vmatprep.subr.mxu0 0.0
    %462 = vmatpush1.msra.mxu0 0.0
    %463 = vmatprep.subr.mxu0 0.0
    %464 = vmatpush1.msra.mxu0 0.0
    %465 = vmatprep.subr.mxu0 0.0
    %466 = vmatpush1.msra.mxu0 0.0
    %467 = vmatprep.subr.mxu0 0.0
    %468 = vmatpush1.msra.mxu0 0.0
    %469 = vmatprep.subr.mxu0 0.0
    %470 = vmatpush1.msra.mxu0 0.0
    %471 = vmatprep.subr.mxu0 0.0
    %472 = vmatpush1.msra.mxu0 0.0
    %473 = vmatprep.subr.mxu0 0.0
    %474 = vmatpush1.msra.mxu0 0.0
    %475 = vmatprep.subr.mxu0 0.0
    %476 = vmatpush1.msra.mxu0 0.0
    %477 = vmatprep.subr.mxu0 0.0
    %478 = vmatpush1.msra.mxu0 0.0
    %479 = vmatprep.subr.mxu0 0.0
    %480 = vmatpush1.msra.mxu0 0.0
    %481 = vmatprep.subr.mxu0 0.0
    %482 = vmatpush1.msra.mxu0 0.0
    %483 = vmatprep.subr.mxu0 0.0
    %484 = vmatpush1.msra.mxu0 0.0
    %485 = vmatprep.subr.mxu0 0.0
    %486 = vmatpush1.msra.mxu0 0.0
    %487 = vmatprep.subr.mxu0 0.0
    %488 = vmatpush1.msra.mxu0 0.0
    %489 = vmatprep.subr.mxu0 0.0
    %490 = vmatpush1.msra.mxu0 0.0
    %491 = vmatprep.subr.mxu0 0.0
    %492 = vmatpush1.msra.mxu0 0.0
    %493 = vmatprep.subr.mxu0 0.0
    %494 = vmatpush1.msra.mxu0 0.0
    %495 = vmatprep.subr.mxu0 0.0
    %496 = vmatpush1.msra.mxu0 0.0
    %497 = vmatprep.subr.mxu0 0.0
    %498 = vmatpush1.msra.mxu0 0.0
    %499 = vmatprep.mubr.f32.mxu0 0.0
    %v500 = vand.u32 %v179, 4294901760
    %v501 = vsub.f32 %v179, %v500
    %v502 = vand.u32 %v501, 4294901760
    %503 = vmatmul.mubr.f32.gmra.mrb[0].mxu0 %v502
    %v504 = vpop.f32.mrb[0].mxu0
    %v505 = vadd.f32 %v428, %v504
    %v506 = vpop.f32.mrb[0].mxu0
    %507 = vdwg.mxu0
    %508 = vmatprep.subr.mxu0 0.0
    %v509 = vand.u32 %v166, 4294901760
    %v510 = vsub.f32 %v166, %v509
    %v511 = vand.u32 %v510, 4294901760
    %512 = vmatpush1.msra.mxu0 %v511
    %513 = vmatprep.subr.mxu0 0.0
    %v514 = vand.u32 %v167, 4294901760
    %v515 = vsub.f32 %v167, %v514
    %v516 = vand.u32 %v515, 4294901760
    %517 = vmatpush1.msra.mxu0 %v516
    %518 = vmatprep.subr.mxu0 0.0
    %v519 = vand.u32 %v168, 4294901760
    %v520 = vsub.f32 %v168, %v519
    %v521 = vand.u32 %v520, 4294901760
    %522 = vmatpush1.msra.mxu0 %v521
    %523 = vmatprep.subr.mxu0 0.0
    %v524 = vand.u32 %v169, 4294901760
    %v525 = vsub.f32 %v169, %v524
    %v526 = vand.u32 %v525, 4294901760
    %527 = vmatpush1.msra.mxu0 %v526
    %528 = vmatprep.subr.mxu0 0.0
    %529 = vmatpush1.msra.mxu0 0.0
    %530 = vmatprep.subr.mxu0 0.0
    %531 = vmatpush1.msra.mxu0 0.0
    %532 = vmatprep.subr.mxu0 0.0
    %533 = vmatpush1.msra.mxu0 0.0
    %534 = vmatprep.subr.mxu0 0.0
    %535 = vmatpush1.msra.mxu0 0.0
    %536 = vmatprep.subr.mxu0 0.0
    %537 = vmatpush1.msra.mxu0 0.0
    %538 = vmatprep.subr.mxu0 0.0
    %539 = vmatpush1.msra.mxu0 0.0
    %540 = vmatprep.subr.mxu0 0.0
    %541 = vmatpush1.msra.mxu0 0.0
    %542 = vmatprep.subr.mxu0 0.0
    %543 = vmatpush1.msra.mxu0 0.0
    %544 = vmatprep.subr.mxu0 0.0
    %545 = vmatpush1.msra.mxu0 0.0
    %546 = vmatprep.subr.mxu0 0.0
    %547 = vmatpush1.msra.mxu0 0.0
    %548 = vmatprep.subr.mxu0 0.0
    %549 = vmatpush1.msra.mxu0 0.0
    %550 = vmatprep.subr.mxu0 0.0
    %551 = vmatpush1.msra.mxu0 0.0
    %552 = vmatprep.subr.mxu0 0.0
    %553 = vmatpush1.msra.mxu0 0.0
    %554 = vmatprep.subr.mxu0 0.0
    %555 = vmatpush1.msra.mxu0 0.0
    %556 = vmatprep.subr.mxu0 0.0
    %557 = vmatpush1.msra.mxu0 0.0
    %558 = vmatprep.subr.mxu0 0.0
    %559 = vmatpush1.msra.mxu0 0.0
    %560 = vmatprep.subr.mxu0 0.0
    %561 = vmatpush1.msra.mxu0 0.0
    %562 = vmatprep.subr.mxu0 0.0
    %563 = vmatpush1.msra.mxu0 0.0
    %564 = vmatprep.subr.mxu0 0.0
    %565 = vmatpush1.msra.mxu0 0.0
    %566 = vmatprep.subr.mxu0 0.0
    %567 = vmatpush1.msra.mxu0 0.0
    %568 = vmatprep.subr.mxu0 0.0
    %569 = vmatpush1.msra.mxu0 0.0
    %570 = vmatprep.subr.mxu0 0.0
    %571 = vmatpush1.msra.mxu0 0.0
    %572 = vmatprep.subr.mxu0 0.0
    %573 = vmatpush1.msra.mxu0 0.0
    %574 = vmatprep.subr.mxu0 0.0
    %575 = vmatpush1.msra.mxu0 0.0
    %576 = vmatprep.subr.mxu0 0.0
    %577 = vmatpush1.msra.mxu0 0.0
    %578 = vmatprep.subr.mxu0 0.0
    %579 = vmatpush1.msra.mxu0 0.0
    %580 = vmatprep.subr.mxu0 0.0
    %581 = vmatpush1.msra.mxu0 0.0
    %582 = vmatprep.subr.mxu0 0.0
    %583 = vmatpush1.msra.mxu0 0.0
    %584 = vmatprep.mubr.f32.mxu0 0.0
    %v585 = vand.u32 %v179, 4294901760
    %586 = vmatmul.mubr.f32.gmra.mrb[0].mxu0 %v585
    %v587 = vpop.f32.mrb[0].mxu0
    %v588 = vadd.f32 %v505, %v587
    %v589 = vpop.f32.mrb[0].mxu0
    %590 = vdwg.mxu0
    %591 = vmatprep.subr.mxu0 0.0
    %v592 = vand.u32 %v166, 4294901760
    %593 = vmatpush1.msra.mxu0 %v592
    %594 = vmatprep.subr.mxu0 0.0
    %v595 = vand.u32 %v167, 4294901760
    %596 = vmatpush1.msra.mxu0 %v595
    %597 = vmatprep.subr.mxu0 0.0
    %v598 = vand.u32 %v168, 4294901760
    %599 = vmatpush1.msra.mxu0 %v598
    %600 = vmatprep.subr.mxu0 0.0
    %v601 = vand.u32 %v169, 4294901760
    %602 = vmatpush1.msra.mxu0 %v601
    %603 = vmatprep.subr.mxu0 0.0
    %604 = vmatpush1.msra.mxu0 0.0
    %605 = vmatprep.subr.mxu0 0.0
    %606 = vmatpush1.msra.mxu0 0.0
    %607 = vmatprep.subr.mxu0 0.0
    %608 = vmatpush1.msra.mxu0 0.0
    %609 = vmatprep.subr.mxu0 0.0
    %610 = vmatpush1.msra.mxu0 0.0
    %611 = vmatprep.subr.mxu0 0.0
    %612 = vmatpush1.msra.mxu0 0.0
    %613 = vmatprep.subr.mxu0 0.0
    %614 = vmatpush1.msra.mxu0 0.0
    %615 = vmatprep.subr.mxu0 0.0
    %616 = vmatpush1.msra.mxu0 0.0
    %617 = vmatprep.subr.mxu0 0.0
    %618 = vmatpush1.msra.mxu0 0.0
    %619 = vmatprep.subr.mxu0 0.0
    %620 = vmatpush1.msra.mxu0 0.0
    %621 = vmatprep.subr.mxu0 0.0
    %622 = vmatpush1.msra.mxu0 0.0
    %623 = vmatprep.subr.mxu0 0.0
    %624 = vmatpush1.msra.mxu0 0.0
    %625 = vmatprep.subr.mxu0 0.0
    %626 = vmatpush1.msra.mxu0 0.0
    %627 = vmatprep.subr.mxu0 0.0
    %628 = vmatpush1.msra.mxu0 0.0
    %629 = vmatprep.subr.mxu0 0.0
    %630 = vmatpush1.msra.mxu0 0.0
    %631 = vmatprep.subr.mxu0 0.0
    %632 = vmatpush1.msra.mxu0 0.0
    %633 = vmatprep.subr.mxu0 0.0
    %634 = vmatpush1.msra.mxu0 0.0
    %635 = vmatprep.subr.mxu0 0.0
    %636 = vmatpush1.msra.mxu0 0.0
    %637 = vmatprep.subr.mxu0 0.0
    %638 = vmatpush1.msra.mxu0 0.0
    %639 = vmatprep.subr.mxu0 0.0
    %640 = vmatpush1.msra.mxu0 0.0
    %641 = vmatprep.subr.mxu0 0.0
    %642 = vmatpush1.msra.mxu0 0.0
    %643 = vmatprep.subr.mxu0 0.0
    %644 = vmatpush1.msra.mxu0 0.0
    %645 = vmatprep.subr.mxu0 0.0
    %646 = vmatpush1.msra.mxu0 0.0
    %647 = vmatprep.subr.mxu0 0.0
    %648 = vmatpush1.msra.mxu0 0.0
    %649 = vmatprep.subr.mxu0 0.0
    %650 = vmatpush1.msra.mxu0 0.0
    %651 = vmatprep.subr.mxu0 0.0
    %652 = vmatpush1.msra.mxu0 0.0
    %653 = vmatprep.subr.mxu0 0.0
    %654 = vmatpush1.msra.mxu0 0.0
    %655 = vmatprep.subr.mxu0 0.0
    %656 = vmatpush1.msra.mxu0 0.0
    %657 = vmatprep.subr.mxu0 0.0
    %658 = vmatpush1.msra.mxu0 0.0
    %659 = vmatprep.mubr.f32.mxu0 0.0
    %v660 = vand.u32 %v179, 4294901760
    %661 = vmatmul.mubr.f32.gmra.mrb[0].mxu0 %v660
    %v662 = vpop.f32.mrb[0].mxu0
    %v663 = vadd.f32 %v588, %v662
    %v664 = vpop.f32.mrb[0].mxu0
    %665 = vdwg.mxu0
    %vm666 = vcmask 1041408
    %v667 = vsel %vm666, %v663, -inf
    %v668 = vrot.slane %v667, 4
    %v669 = vmax.f32 %v667, %v668
    %v670 = vrot.slane %v669, 2
    %v671 = vmax.f32 %v669, %v670
    %v672 = vrot.slane %v671, 1
    %v673 = vmax.f32 %v671, %v672
    %v674 = vsub.f32 %v663, %v673
    %v675 = vmul.f32 %v674, 1.442695
    %v676 = vpow.pop %v675
    %v677 = vsel %vm666, %v676, 0.0
    %v678 = vrot.slane %v677, 4
    %v679 = vadd.f32 %v677, %v678
    %v680 = vrot.slane %v679, 2
    %v681 = vadd.f32 %v679, %v680
    %v682 = vrot.slane %v681, 1
    %v683 = vadd.f32 %v681, %v682
    %v684 = vrcp.pop %v683
    %v685 = vmul.f32 %v676, %v684
    %686 = vst [vmem:[#allocation2] sm:$0x3] %v685
    // Predicated region
    $region22: #{actor_forward.1} parent=1 // pred_check
      _
    $region23: #{actor_forward.1} parent=1 // pred_check_branch
      %688 = sbr.rel (0) target = $region25
    $region24: #{actor_forward.1} parent=1 // pred_region
      %s690 = ssub.s32 32, 32
      %691 = vsyncadd [#allocation3], %s690
      %s693 = sshll.u32 [#allocation2], 4
      %s694 = int_to_ptr.vmem [resolvable:$true] %s693
      %696 = dma.vmem_to_hbm [thread:$0]  %s694, 32, %s5, [#allocation3]
    $region25: #{actor_forward.1} parent=1 // pred_fallthru
      _
    // Predicated region
    $region26: #{actor_forward.1} parent=1 // pred_check
      _
    $region27: #{actor_forward.1} parent=1 // pred_check_branch
      %698 = sbr.rel (0) target = $region29
    $region28: #{actor_forward.1} parent=1 // pred_region
      %699 = dma.done [#allocation3], 32
    $region29: #{actor_forward.1} parent=1 // pred_fallthru
      _
    %700 = vsyncpa [#allocation3], 1

</llo_original>
